<compile_context>
chip_gen: v5e
topology: v5e:2x2
jax: 0.10.0
libtpu: 0.0.40
codegen_flags: <defaults>
</compile_context>

<pallas_src>
import functools

import jax
import jax.numpy as jnp
from jax.experimental import pallas as pl
from jax.experimental.pallas import tpu as pltpu

LAT_PAD = 128   # lane-dense padded latent width (full 128-lane vreg group)
SUBLANE = 8     # f32 sublane count -> pad batch to a multiple of this


# ----------------------------------------------------------------------------
# Fused VAE forward kernel (single grid point, everything resident in VMEM)
# ----------------------------------------------------------------------------
def _vae_fused_kernel(x_ref, eps_ref,
                      ew1_ref, eb1_ref,
                      mlvw_ref, mlvb_ref,
                      dw1_ref, db1_ref,
                      dw2_ref, db2_ref,
                      out_ref, mulv_ref,
                      *, lat_pad):
    # ---- encoder hidden: h = relu(x @ W_enc + b_enc)
    h = jnp.dot(x_ref[...], ew1_ref[...], preferred_element_type=jnp.float32)
    h = jnp.maximum(h + eb1_ref[...], 0.0)

    # ---- fused mu || log_var: single MXU pass into a lane-dense slab
    mlv = jnp.dot(h, mlvw_ref[...], preferred_element_type=jnp.float32)
    mlv = mlv + mlvb_ref[...]
    mulv_ref[...] = mlv                       # (N_pad, 2*lat_pad), unmasked stores

    mu = mlv[:, :lat_pad]                     # lane-aligned static slices
    log_var = mlv[:, lat_pad:]

    # ---- reparameterize: z = mu + exp(0.5*log_var) * eps
    # Padded lanes: mu = log_var = 0, eps = 0  ->  z stays 0 (harmless).
    z = mu + jnp.exp(0.5 * log_var) * eps_ref[...]

    # ---- decoder: relu(z @ W_d1 + b_d1) ; sigmoid(. @ W_d2 + b_d2)
    hd = jnp.dot(z, dw1_ref[...], preferred_element_type=jnp.float32)
    hd = jnp.maximum(hd + db1_ref[...], 0.0)
    y = jnp.dot(hd, dw2_ref[...], preferred_element_type=jnp.float32)
    out_ref[...] = jax.nn.sigmoid(y + db2_ref[...])


# ----------------------------------------------------------------------------
# Face_Generator.forward equivalent (JAX glue: pad -> fused kernel -> slice)
# ----------------------------------------------------------------------------
def face_generator_forward(params, x, eps, latent):
    """Mirrors Face_Generator.forward: returns (output, mu, log_var)."""
    n, c, h, w = x.shape
    in_dim = c * h * w
    n_pad = ((n + SUBLANE - 1) // SUBLANE) * SUBLANE

    x_flat = x.reshape(n, in_dim)                        # torch .view(N, -1)
    x_pad = jnp.pad(x_flat, ((0, n_pad - n), (0, 0)))
    eps_pad = jnp.pad(eps, ((0, n_pad - n), (0, LAT_PAD - latent)))

    hidden = params["enc_w1"].shape[1]
    flops = 2 * n_pad * (in_dim * hidden + hidden * 2 * LAT_PAD
                         + LAT_PAD * hidden + hidden * in_dim)
    transcendentals = n_pad * (LAT_PAD + in_dim)         # exp in reparam + sigmoid
    bytes_accessed = 4 * (x_pad.size + eps_pad.size
                          + sum(int(p.size) for p in params.values())
                          + n_pad * in_dim + n_pad * 2 * LAT_PAD)

    kernel = functools.partial(_vae_fused_kernel, lat_pad=LAT_PAD)
    out_pad, mulv_pad = pl.pallas_call(
        kernel,
        out_shape=(
            jax.ShapeDtypeStruct((n_pad, in_dim), jnp.float32),
            jax.ShapeDtypeStruct((n_pad, 2 * LAT_PAD), jnp.float32),
        ),
        in_specs=[pl.BlockSpec(memory_space=pltpu.VMEM)] * 10,
        out_specs=(pl.BlockSpec(memory_space=pltpu.VMEM),
                   pl.BlockSpec(memory_space=pltpu.VMEM)),
        cost_estimate=pl.CostEstimate(flops=flops,
                                      transcendentals=transcendentals,
                                      bytes_accessed=bytes_accessed),
    )(x_pad, eps_pad,
      params["enc_w1"], params["enc_b1"],
      params["mulv_w"], params["mulv_b"],
      params["dec_w1"], params["dec_b1"],
      params["dec_w2"], params["dec_b2"])

    output = out_pad[:n].reshape(n, c, h, w)             # back to NCHW
    mu = mulv_pad[:n, :latent]
    log_var = mulv_pad[:n, LAT_PAD:LAT_PAD + latent]
    return output, mu, log_var


# ----------------------------------------------------------------------------
# Deterministic parameter initialization (pre-padded to kernel layout, once)
# ----------------------------------------------------------------------------
def init_params(key, in_dim, hidden, latent):
    ks = jax.random.split(key, 6)
    scale = 0.02

    mu_w = scale * jax.random.normal(ks[1], (hidden, latent), jnp.float32)
    lv_w = scale * jax.random.normal(ks[2], (hidden, latent), jnp.float32)
    mulv_w = jnp.zeros((hidden, 2 * LAT_PAD), jnp.float32)
    mulv_w = mulv_w.at[:, :latent].set(mu_w)
    mulv_w = mulv_w.at[:, LAT_PAD:LAT_PAD + latent].set(lv_w)

    dec_w1 = scale * jax.random.normal(ks[3], (latent, hidden), jnp.float32)
    dec_w1_pad = jnp.zeros((LAT_PAD, hidden), jnp.float32).at[:latent].set(dec_w1)

    return {
        "enc_w1": scale * jax.random.normal(ks[0], (in_dim, hidden), jnp.float32),
        "enc_b1": jnp.zeros((1, hidden), jnp.float32),
        "mulv_w": mulv_w,                                # mu_w || lv_w (padded)
        "mulv_b": jnp.zeros((1, 2 * LAT_PAD), jnp.float32),
        "dec_w1": dec_w1_pad,                            # latent rows padded to 128
        "dec_b1": jnp.zeros((1, hidden), jnp.float32),
        "dec_w2": scale * jax.random.normal(ks[4], (hidden, in_dim), jnp.float32),
        "dec_b2": jnp.zeros((1, in_dim), jnp.float32),
    }


# ----------------------------------------------------------------------------
# Main
# ----------------------------------------------------------------------------
if __name__ == "__main__":
    N, C, H, W = 2, 4, 16, 16
    HIDDEN, LATENT = 32, 8

    key = jax.random.PRNGKey(0)
    k_x, k_eps, k_p = jax.random.split(key, 3)

    x = jax.random.normal(k_x, (N, C, H, W), jnp.float32)
    eps = jax.random.normal(k_eps, (N, LATENT), jnp.float32)  # deterministic noise
    params = init_params(k_p, C * H * W, HIDDEN, LATENT)

    fwd = jax.jit(functools.partial(face_generator_forward, latent=LATENT))
    output, mu, log_var = fwd(params, x, eps)
    jax.block_until_ready((output, mu, log_var))

    assert output.shape == (N, C, H, W)
    assert mu.shape == (N, LATENT)
    assert log_var.shape == (N, LATENT)
    print("KERNEL_OK")
</pallas_src>

<mosaic_0001>
module attributes {stable_mosaic.version = 11 : i64} {
  func.func @_vae_fused_kernel(%arg0: memref<8x1024xf32, #tpu.memory_space<vmem>>, %arg1: memref<8x128xf32, #tpu.memory_space<vmem>>, %arg2: memref<1024x32xf32, #tpu.memory_space<vmem>>, %arg3: memref<1x32xf32, #tpu.memory_space<vmem>>, %arg4: memref<32x256xf32, #tpu.memory_space<vmem>>, %arg5: memref<1x256xf32, #tpu.memory_space<vmem>>, %arg6: memref<128x32xf32, #tpu.memory_space<vmem>>, %arg7: memref<1x32xf32, #tpu.memory_space<vmem>>, %arg8: memref<32x1024xf32, #tpu.memory_space<vmem>>, %arg9: memref<1x1024xf32, #tpu.memory_space<vmem>>, %arg10: memref<8x1024xf32, #tpu.memory_space<vmem>>, %arg11: memref<8x256xf32, #tpu.memory_space<vmem>>) attributes {dimension_semantics = [], scalar_prefetch = 0 : i64, scratch_operands = 0 : i64, tpu.core_type = #tpu.core_type<tc>} {
    %c0 = arith.constant 0 : index
    %c0_0 = arith.constant 0 : index
    %0 = vector.load %arg0[%c0, %c0_0] : memref<8x1024xf32, #tpu.memory_space<vmem>>, vector<8x1024xf32>
    %c0_1 = arith.constant 0 : index
    %c0_2 = arith.constant 0 : index
    %1 = vector.load %arg2[%c0_1, %c0_2] : memref<1024x32xf32, #tpu.memory_space<vmem>>, vector<1024x32xf32>
    %cst = arith.constant dense<0.000000e+00> : vector<8x32xf32>
    %2 = tpu.matmul %0, %1, %cst {dimension_numbers = #tpu.dot_dimension_numbers<[1], [0], [0], [1], [0, 0, 1, 1], [], []>} : vector<8x1024xf32>, vector<1024x32xf32>, vector<8x32xf32> -> vector<8x32xf32>
    %c0_3 = arith.constant 0 : index
    %c0_4 = arith.constant 0 : index
    %3 = vector.load %arg3[%c0_3, %c0_4] : memref<1x32xf32, #tpu.memory_space<vmem>>, vector<1x32xf32>
    %4 = vector.broadcast %3 : vector<1x32xf32> to vector<8x32xf32>
    %5 = arith.addf %2, %4 : vector<8x32xf32>
    %cst_5 = arith.constant 0.000000e+00 : f32
    %6 = vector.broadcast %cst_5 : f32 to vector<8x32xf32>
    %7 = arith.maximumf %5, %6 : vector<8x32xf32>
    %c0_6 = arith.constant 0 : index
    %c0_7 = arith.constant 0 : index
    %8 = vector.load %arg4[%c0_6, %c0_7] : memref<32x256xf32, #tpu.memory_space<vmem>>, vector<32x256xf32>
    %cst_8 = arith.constant dense<0.000000e+00> : vector<8x256xf32>
    %9 = tpu.matmul %7, %8, %cst_8 {dimension_numbers = #tpu.dot_dimension_numbers<[1], [0], [0], [1], [0, 0, 1, 1], [], []>} : vector<8x32xf32>, vector<32x256xf32>, vector<8x256xf32> -> vector<8x256xf32>
    %c0_9 = arith.constant 0 : index
    %c0_10 = arith.constant 0 : index
    %10 = vector.load %arg5[%c0_9, %c0_10] : memref<1x256xf32, #tpu.memory_space<vmem>>, vector<1x256xf32>
    %11 = vector.broadcast %10 : vector<1x256xf32> to vector<8x256xf32>
    %12 = arith.addf %9, %11 : vector<8x256xf32>
    %c0_11 = arith.constant 0 : index
    %c0_12 = arith.constant 0 : index
    %13 = vector.load %arg11[%c0_11, %c0_12] : memref<8x256xf32, #tpu.memory_space<vmem>>, vector<8x256xf32>
    tpu.vector_store %arg11[%c0_11, %c0_12], %12 {strides = array<i32>} : memref<8x256xf32, #tpu.memory_space<vmem>>, vector<8x256xf32>,
    %14 = vector.extract_strided_slice %12 {offsets = [0, 0], sizes = [8, 128], strides = [1, 1]} : vector<8x256xf32> to vector<8x128xf32>
    %15 = vector.extract_strided_slice %12 {offsets = [0, 128], sizes = [8, 128], strides = [1, 1]} : vector<8x256xf32> to vector<8x128xf32>
    %cst_13 = arith.constant 5.000000e-01 : f32
    %16 = vector.broadcast %cst_13 : f32 to vector<8x128xf32>
    %17 = arith.mulf %16, %15 : vector<8x128xf32>
    %18 = math.exp %17 : vector<8x128xf32>
    %c0_14 = arith.constant 0 : index
    %c0_15 = arith.constant 0 : index
    %19 = vector.load %arg1[%c0_14, %c0_15] : memref<8x128xf32, #tpu.memory_space<vmem>>, vector<8x128xf32>
    %20 = arith.mulf %18, %19 : vector<8x128xf32>
    %21 = arith.addf %14, %20 : vector<8x128xf32>
    %c0_16 = arith.constant 0 : index
    %c0_17 = arith.constant 0 : index
    %22 = vector.load %arg6[%c0_16, %c0_17] : memref<128x32xf32, #tpu.memory_space<vmem>>, vector<128x32xf32>
    %cst_18 = arith.constant dense<0.000000e+00> : vector<8x32xf32>
    %23 = tpu.matmul %21, %22, %cst_18 {dimension_numbers = #tpu.dot_dimension_numbers<[1], [0], [0], [1], [0, 0, 1, 1], [], []>} : vector<8x128xf32>, vector<128x32xf32>, vector<8x32xf32> -> vector<8x32xf32>
    %c0_19 = arith.constant 0 : index
    %c0_20 = arith.constant 0 : index
    %24 = vector.load %arg7[%c0_19, %c0_20] : memref<1x32xf32, #tpu.memory_space<vmem>>, vector<1x32xf32>
    %25 = vector.broadcast %24 : vector<1x32xf32> to vector<8x32xf32>
    %26 = arith.addf %23, %25 : vector<8x32xf32>
    %cst_21 = arith.constant 0.000000e+00 : f32
    %27 = vector.broadcast %cst_21 : f32 to vector<8x32xf32>
    %28 = arith.maximumf %26, %27 : vector<8x32xf32>
    %c0_22 = arith.constant 0 : index
    %c0_23 = arith.constant 0 : index
    %29 = vector.load %arg8[%c0_22, %c0_23] : memref<32x1024xf32, #tpu.memory_space<vmem>>, vector<32x1024xf32>
    %cst_24 = arith.constant dense<0.000000e+00> : vector<8x1024xf32>
    %30 = tpu.matmul %28, %29, %cst_24 {dimension_numbers = #tpu.dot_dimension_numbers<[1], [0], [0], [1], [0, 0, 1, 1], [], []>} : vector<8x32xf32>, vector<32x1024xf32>, vector<8x1024xf32> -> vector<8x1024xf32>
    %c0_25 = arith.constant 0 : index
    %c0_26 = arith.constant 0 : index
    %31 = vector.load %arg9[%c0_25, %c0_26] : memref<1x1024xf32, #tpu.memory_space<vmem>>, vector<1x1024xf32>
    %32 = vector.broadcast %31 : vector<1x1024xf32> to vector<8x1024xf32>
    %33 = arith.addf %30, %32 : vector<8x1024xf32>
    %34 = arith.negf %33 : vector<8x1024xf32>
    %35 = math.exp %34 : vector<8x1024xf32>
    %cst_27 = arith.constant 1.000000e+00 : f32
    %36 = vector.broadcast %cst_27 : f32 to vector<8x1024xf32>
    %37 = arith.addf %36, %35 : vector<8x1024xf32>
    %38 = arith.divf %36, %37 : vector<8x1024xf32>
    %c0_28 = arith.constant 0 : index
    %c0_29 = arith.constant 0 : index
    %39 = vector.load %arg10[%c0_28, %c0_29] : memref<8x1024xf32, #tpu.memory_space<vmem>>, vector<8x1024xf32>
    tpu.vector_store %arg10[%c0_28, %c0_29], %38 {strides = array<i32>} : memref<8x1024xf32, #tpu.memory_space<vmem>>, vector<8x1024xf32>,
    return
  }
}

</mosaic_0001>

<llo_original>
// kernel: face_generator_forward.1
$region0: #{face_generator_forward.1}
  #allocation0 [shape = 'u32[]', space=smem, size = 0x4, offset = 0x4, fixed_abs, tag = 'smem constant byte address 0x4 - core index']
  #allocation1 [shape = 'u32[72,128]{1,0:T(1,128)}', space=vmem, size = 0x9000, scoped, tag = 'internal scratch']
  %s0 = inlined_call_operand.vmem [shape: f32[8,1024], index: 0, kind: input, shape index: {}]
  %s1 = inlined_call_operand.vmem [shape: f32[8,128], index: 1, kind: input, shape index: {}]
  %s2 = inlined_call_operand.vmem [shape: f32[1024,32], index: 2, kind: input, shape index: {}]
  %s3 = inlined_call_operand.vmem [shape: f32[1,32], index: 3, kind: input, shape index: {}]
  %s4 = inlined_call_operand.vmem [shape: f32[32,256], index: 4, kind: input, shape index: {}]
  %s5 = inlined_call_operand.vmem [shape: f32[1,256], index: 5, kind: input, shape index: {}]
  %s6 = inlined_call_operand.vmem [shape: f32[128,32], index: 6, kind: input, shape index: {}]
  %s7 = inlined_call_operand.vmem [shape: f32[1,32], index: 7, kind: input, shape index: {}]
  %s8 = inlined_call_operand.vmem [shape: f32[32,1024], index: 8, kind: input, shape index: {}]
  %s9 = inlined_call_operand.vmem [shape: f32[1,1024], index: 9, kind: input, shape index: {}]
  %s10 = inlined_call_operand.vmem [shape: f32[8,1024], index: 10, kind: output, shape index: {0}]
  %s11 = inlined_call_operand.vmem [shape: f32[8,256], index: 11, kind: output, shape index: {1}]
  %12 = xla_tuple %s10, %s11
  %s13 = sld [smem:[#allocation0]]
  $region58: #{face_generator_forward.1} parent=0
    _
  %s15 = ssub.s32 1, %s13
  %s16 = scalar_select 0, %s15, %s13
  // Predicated region
  $region2: #{face_generator_forward.1} parent=0 // pred_check
    _
  $region3: #{face_generator_forward.1} parent=0 // pred_check_branch
    %18 = sbr.rel (0) target = $region5
  $region4: #{face_generator_forward.1} parent=0 // pred_region
    _
  $region5: #{face_generator_forward.1} parent=0 // pred_fallthru
    _
  // Predicated region
  $region6: #{face_generator_forward.1} parent=0 // pred_check
    _
  $region7: #{face_generator_forward.1} parent=0 // pred_check_branch
    %20 = sbr.rel (0) target = $region9
  $region8: #{face_generator_forward.1} parent=0 // pred_region
    _
  $region9: #{face_generator_forward.1} parent=0 // pred_fallthru
    _
  // Predicated region
  $region10: #{face_generator_forward.1} parent=0 // pred_check
    _
  $region11: #{face_generator_forward.1} parent=0 // pred_check_branch
    %22 = sbr.rel (0) target = $region13
  $region12: #{face_generator_forward.1} parent=0 // pred_region
    _
  $region13: #{face_generator_forward.1} parent=0 // pred_fallthru
    _
  // Predicated region
  $region14: #{face_generator_forward.1} parent=0 // pred_check
    _
  $region15: #{face_generator_forward.1} parent=0 // pred_check_branch
    %24 = sbr.rel (0) target = $region17
  $region16: #{face_generator_forward.1} parent=0 // pred_region
    _
  $region17: #{face_generator_forward.1} parent=0 // pred_fallthru
    _
  // Predicated region
  $region18: #{face_generator_forward.1} parent=0 // pred_check
    _
  $region19: #{face_generator_forward.1} parent=0 // pred_check_branch
    %26 = sbr.rel (0) target = $region21
  $region20: #{face_generator_forward.1} parent=0 // pred_region
    _
  $region21: #{face_generator_forward.1} parent=0 // pred_fallthru
    _
  // Predicated region
  $region22: #{face_generator_forward.1} parent=0 // pred_check
    _
  $region23: #{face_generator_forward.1} parent=0 // pred_check_branch
    %28 = sbr.rel (0) target = $region25
  $region24: #{face_generator_forward.1} parent=0 // pred_region
    _
  $region25: #{face_generator_forward.1} parent=0 // pred_fallthru
    _
  // Predicated region
  $region26: #{face_generator_forward.1} parent=0 // pred_check
    _
  $region27: #{face_generator_forward.1} parent=0 // pred_check_branch
    %30 = sbr.rel (0) target = $region29
  $region28: #{face_generator_forward.1} parent=0 // pred_region
    _
  $region29: #{face_generator_forward.1} parent=0 // pred_fallthru
    _
  // Predicated region
  $region30: #{face_generator_forward.1} parent=0 // pred_check
    _
  $region31: #{face_generator_forward.1} parent=0 // pred_check_branch
    %32 = sbr.rel (0) target = $region33
  $region32: #{face_generator_forward.1} parent=0 // pred_region
    _
  $region33: #{face_generator_forward.1} parent=0 // pred_fallthru
    _
  // Predicated region
  $region34: #{face_generator_forward.1} parent=0 // pred_check
    _
  $region35: #{face_generator_forward.1} parent=0 // pred_check_branch
    %34 = sbr.rel (0) target = $region37
  $region36: #{face_generator_forward.1} parent=0 // pred_region
    _
  $region37: #{face_generator_forward.1} parent=0 // pred_fallthru
    _
  // Predicated region
  $region38: #{face_generator_forward.1} parent=0 // pred_check
    _
  $region39: #{face_generator_forward.1} parent=0 // pred_check_branch
    %36 = sbr.rel (0) target = $region41
  $region40: #{face_generator_forward.1} parent=0 // pred_region
    _
  $region41: #{face_generator_forward.1} parent=0 // pred_fallthru
    _
  %v37 = vld [vmem:[%s0] sm:$0xff]
  %v38 = vld [vmem:[%s0 + $0x8] sm:$0xff]
  %v39 = vld [vmem:[%s0 + $0x10] sm:$0xff]
  %v40 = vld [vmem:[%s0 + $0x18] sm:$0xff]
  %v41 = vld [vmem:[%s0 + $0x20] sm:$0xff]
  %v42 = vld [vmem:[%s0 + $0x28] sm:$0xff]
  %v43 = vld [vmem:[%s0 + $0x30] sm:$0xff]
  %v44 = vld [vmem:[%s0 + $0x38] sm:$0xff]
  %v45 = vld [vmem:[%s2] sm:$0xff]
  %v46 = vld [vmem:[%s2 + $0x8] sm:$0xff]
  %v47 = vld [vmem:[%s2 + $0x10] sm:$0xff]
  %v48 = vld [vmem:[%s2 + $0x18] sm:$0xff]
  %v49 = vld [vmem:[%s2 + $0x20] sm:$0xff]
  %v50 = vld [vmem:[%s2 + $0x28] sm:$0xff]
  %v51 = vld [vmem:[%s2 + $0x30] sm:$0xff]
  %v52 = vld [vmem:[%s2 + $0x38] sm:$0xff]
  %v53 = vld [vmem:[%s2 + $0x40] sm:$0xff]
  %v54 = vld [vmem:[%s2 + $0x48] sm:$0xff]
  %v55 = vld [vmem:[%s2 + $0x50] sm:$0xff]
  %v56 = vld [vmem:[%s2 + $0x58] sm:$0xff]
  %v57 = vld [vmem:[%s2 + $0x60] sm:$0xff]
  %v58 = vld [vmem:[%s2 + $0x68] sm:$0xff]
  %v59 = vld [vmem:[%s2 + $0x70] sm:$0xff]
  %v60 = vld [vmem:[%s2 + $0x78] sm:$0xff]
  %v61 = vld [vmem:[%s2 + $0x80] sm:$0xff]
  %v62 = vld [vmem:[%s2 + $0x88] sm:$0xff]
  %v63 = vld [vmem:[%s2 + $0x90] sm:$0xff]
  %v64 = vld [vmem:[%s2 + $0x98] sm:$0xff]
  %v65 = vld [vmem:[%s2 + $0xa0] sm:$0xff]
  %v66 = vld [vmem:[%s2 + $0xa8] sm:$0xff]
  %v67 = vld [vmem:[%s2 + $0xb0] sm:$0xff]
  %v68 = vld [vmem:[%s2 + $0xb8] sm:$0xff]
  %v69 = vld [vmem:[%s2 + $0xc0] sm:$0xff]
  %v70 = vld [vmem:[%s2 + $0xc8] sm:$0xff]
  %v71 = vld [vmem:[%s2 + $0xd0] sm:$0xff]
  %v72 = vld [vmem:[%s2 + $0xd8] sm:$0xff]
  %v73 = vld [vmem:[%s2 + $0xe0] sm:$0xff]
  %v74 = vld [vmem:[%s2 + $0xe8] sm:$0xff]
  %v75 = vld [vmem:[%s2 + $0xf0] sm:$0xff]
  %v76 = vld [vmem:[%s2 + $0xf8] sm:$0xff]
  %v77 = vld [vmem:[%s2 + $0x100] sm:$0xff]
  %v78 = vld [vmem:[%s2 + $0x108] sm:$0xff]
  %v79 = vld [vmem:[%s2 + $0x110] sm:$0xff]
  %v80 = vld [vmem:[%s2 + $0x118] sm:$0xff]
  %v81 = vld [vmem:[%s2 + $0x120] sm:$0xff]
  %v82 = vld [vmem:[%s2 + $0x128] sm:$0xff]
  %v83 = vld [vmem:[%s2 + $0x130] sm:$0xff]
  %v84 = vld [vmem:[%s2 + $0x138] sm:$0xff]
  %v85 = vld [vmem:[%s2 + $0x140] sm:$0xff]
  %v86 = vld [vmem:[%s2 + $0x148] sm:$0xff]
  %v87 = vld [vmem:[%s2 + $0x150] sm:$0xff]
  %v88 = vld [vmem:[%s2 + $0x158] sm:$0xff]
  %v89 = vld [vmem:[%s2 + $0x160] sm:$0xff]
  %v90 = vld [vmem:[%s2 + $0x168] sm:$0xff]
  %v91 = vld [vmem:[%s2 + $0x170] sm:$0xff]
  %v92 = vld [vmem:[%s2 + $0x178] sm:$0xff]
  %v93 = vld [vmem:[%s2 + $0x180] sm:$0xff]
  %v94 = vld [vmem:[%s2 + $0x188] sm:$0xff]
  %v95 = vld [vmem:[%s2 + $0x190] sm:$0xff]
  %v96 = vld [vmem:[%s2 + $0x198] sm:$0xff]
  %v97 = vld [vmem:[%s2 + $0x1a0] sm:$0xff]
  %v98 = vld [vmem:[%s2 + $0x1a8] sm:$0xff]
  %v99 = vld [vmem:[%s2 + $0x1b0] sm:$0xff]
  %v100 = vld [vmem:[%s2 + $0x1b8] sm:$0xff]
  %v101 = vld [vmem:[%s2 + $0x1c0] sm:$0xff]
  %v102 = vld [vmem:[%s2 + $0x1c8] sm:$0xff]
  %v103 = vld [vmem:[%s2 + $0x1d0] sm:$0xff]
  %v104 = vld [vmem:[%s2 + $0x1d8] sm:$0xff]
  %v105 = vld [vmem:[%s2 + $0x1e0] sm:$0xff]
  %v106 = vld [vmem:[%s2 + $0x1e8] sm:$0xff]
  %v107 = vld [vmem:[%s2 + $0x1f0] sm:$0xff]
  %v108 = vld [vmem:[%s2 + $0x1f8] sm:$0xff]
  %v109 = vld [vmem:[%s2 + $0x200] sm:$0xff]
  %v110 = vld [vmem:[%s2 + $0x208] sm:$0xff]
  %v111 = vld [vmem:[%s2 + $0x210] sm:$0xff]
  %v112 = vld [vmem:[%s2 + $0x218] sm:$0xff]
  %v113 = vld [vmem:[%s2 + $0x220] sm:$0xff]
  %v114 = vld [vmem:[%s2 + $0x228] sm:$0xff]
  %v115 = vld [vmem:[%s2 + $0x230] sm:$0xff]
  %v116 = vld [vmem:[%s2 + $0x238] sm:$0xff]
  %v117 = vld [vmem:[%s2 + $0x240] sm:$0xff]
  %v118 = vld [vmem:[%s2 + $0x248] sm:$0xff]
  %v119 = vld [vmem:[%s2 + $0x250] sm:$0xff]
  %v120 = vld [vmem:[%s2 + $0x258] sm:$0xff]
  %v121 = vld [vmem:[%s2 + $0x260] sm:$0xff]
  %v122 = vld [vmem:[%s2 + $0x268] sm:$0xff]
  %v123 = vld [vmem:[%s2 + $0x270] sm:$0xff]
  %v124 = vld [vmem:[%s2 + $0x278] sm:$0xff]
  %v125 = vld [vmem:[%s2 + $0x280] sm:$0xff]
  %v126 = vld [vmem:[%s2 + $0x288] sm:$0xff]
  %v127 = vld [vmem:[%s2 + $0x290] sm:$0xff]
  %v128 = vld [vmem:[%s2 + $0x298] sm:$0xff]
  %v129 = vld [vmem:[%s2 + $0x2a0] sm:$0xff]
  %v130 = vld [vmem:[%s2 + $0x2a8] sm:$0xff]
  %v131 = vld [vmem:[%s2 + $0x2b0] sm:$0xff]
  %v132 = vld [vmem:[%s2 + $0x2b8] sm:$0xff]
  %v133 = vld [vmem:[%s2 + $0x2c0] sm:$0xff]
  %v134 = vld [vmem:[%s2 + $0x2c8] sm:$0xff]
  %v135 = vld [vmem:[%s2 + $0x2d0] sm:$0xff]
  %v136 = vld [vmem:[%s2 + $0x2d8] sm:$0xff]
  %v137 = vld [vmem:[%s2 + $0x2e0] sm:$0xff]
  %v138 = vld [vmem:[%s2 + $0x2e8] sm:$0xff]
  %v139 = vld [vmem:[%s2 + $0x2f0] sm:$0xff]
  %v140 = vld [vmem:[%s2 + $0x2f8] sm:$0xff]
  %v141 = vld [vmem:[%s2 + $0x300] sm:$0xff]
  %v142 = vld [vmem:[%s2 + $0x308] sm:$0xff]
  %v143 = vld [vmem:[%s2 + $0x310] sm:$0xff]
  %v144 = vld [vmem:[%s2 + $0x318] sm:$0xff]
  %v145 = vld [vmem:[%s2 + $0x320] sm:$0xff]
  %v146 = vld [vmem:[%s2 + $0x328] sm:$0xff]
  %v147 = vld [vmem:[%s2 + $0x330] sm:$0xff]
  %v148 = vld [vmem:[%s2 + $0x338] sm:$0xff]
  %v149 = vld [vmem:[%s2 + $0x340] sm:$0xff]
  %v150 = vld [vmem:[%s2 + $0x348] sm:$0xff]
  %v151 = vld [vmem:[%s2 + $0x350] sm:$0xff]
  %v152 = vld [vmem:[%s2 + $0x358] sm:$0xff]
  %v153 = vld [vmem:[%s2 + $0x360] sm:$0xff]
  %v154 = vld [vmem:[%s2 + $0x368] sm:$0xff]
  %v155 = vld [vmem:[%s2 + $0x370] sm:$0xff]
  %v156 = vld [vmem:[%s2 + $0x378] sm:$0xff]
  %v157 = vld [vmem:[%s2 + $0x380] sm:$0xff]
  %v158 = vld [vmem:[%s2 + $0x388] sm:$0xff]
  %v159 = vld [vmem:[%s2 + $0x390] sm:$0xff]
  %v160 = vld [vmem:[%s2 + $0x398] sm:$0xff]
  %v161 = vld [vmem:[%s2 + $0x3a0] sm:$0xff]
  %v162 = vld [vmem:[%s2 + $0x3a8] sm:$0xff]
  %v163 = vld [vmem:[%s2 + $0x3b0] sm:$0xff]
  %v164 = vld [vmem:[%s2 + $0x3b8] sm:$0xff]
  %v165 = vld [vmem:[%s2 + $0x3c0] sm:$0xff]
  %v166 = vld [vmem:[%s2 + $0x3c8] sm:$0xff]
  %v167 = vld [vmem:[%s2 + $0x3d0] sm:$0xff]
  %v168 = vld [vmem:[%s2 + $0x3d8] sm:$0xff]
  %v169 = vld [vmem:[%s2 + $0x3e0] sm:$0xff]
  %v170 = vld [vmem:[%s2 + $0x3e8] sm:$0xff]
  %v171 = vld [vmem:[%s2 + $0x3f0] sm:$0xff]
  %v172 = vld [vmem:[%s2 + $0x3f8] sm:$0xff]
  %v173 = vld [vmem:[%s3] sm:$0x1]
  %v175 = vperm.slane %v173, 0
  %177 = vmatpush.msra.mxu0 %v60
  %178 = vmatpush.msra.mxu0 %v59
  %179 = vmatpush.msra.mxu0 %v58
  %180 = vmatpush.msra.mxu0 %v57
  %181 = vmatpush.msra.mxu0 %v56
  %182 = vmatpush.msra.mxu0 %v55
  %183 = vmatpush.msra.mxu0 %v54
  %184 = vmatpush.msra.mxu0 %v53
  %185 = vmatpush.msra.mxu0 %v52
  %186 = vmatpush.msra.mxu0 %v51
  %187 = vmatpush.msra.mxu0 %v50
  %188 = vmatpush.msra.mxu0 %v49
  %189 = vmatpush.msra.mxu0 %v48
  %190 = vmatpush.msra.mxu0 %v47
  %191 = vmatpush.msra.mxu0 %v46
  %192 = vmatpush.msra.mxu0 %v45
  %193 = vmatmul.f32.gmra.mxu0 %v37
  %v194 = vpop.f32.mrf.mxu0
  %v195 = vadd.f32 %v175, %v194
  %196 = vdwg.mxu0
  %197 = vmatpush.msra.mxu0 %v76
  %198 = vmatpush.msra.mxu0 %v75
  %199 = vmatpush.msra.mxu0 %v74
  %200 = vmatpush.msra.mxu0 %v73
  %201 = vmatpush.msra.mxu0 %v72
  %202 = vmatpush.msra.mxu0 %v71
  %203 = vmatpush.msra.mxu0 %v70
  %204 = vmatpush.msra.mxu0 %v69
  %205 = vmatpush.msra.mxu0 %v68
  %206 = vmatpush.msra.mxu0 %v67
  %207 = vmatpush.msra.mxu0 %v66
  %208 = vmatpush.msra.mxu0 %v65
  %209 = vmatpush.msra.mxu0 %v64
  %210 = vmatpush.msra.mxu0 %v63
  %211 = vmatpush.msra.mxu0 %v62
  %212 = vmatpush.msra.mxu0 %v61
  %213 = vmatmul.f32.gmra.mxu0 %v38
  %v214 = vpop.f32.mrf.mxu0
  %v215 = vadd.f32 %v195, %v214
  %216 = vdwg.mxu0
  %217 = vmatpush.msra.mxu0 %v92
  %218 = vmatpush.msra.mxu0 %v91
  %219 = vmatpush.msra.mxu0 %v90
  %220 = vmatpush.msra.mxu0 %v89
  %221 = vmatpush.msra.mxu0 %v88
  %222 = vmatpush.msra.mxu0 %v87
  %223 = vmatpush.msra.mxu0 %v86
  %224 = vmatpush.msra.mxu0 %v85
  %225 = vmatpush.msra.mxu0 %v84
  %226 = vmatpush.msra.mxu0 %v83
  %227 = vmatpush.msra.mxu0 %v82
  %228 = vmatpush.msra.mxu0 %v81
  %229 = vmatpush.msra.mxu0 %v80
  %230 = vmatpush.msra.mxu0 %v79
  %231 = vmatpush.msra.mxu0 %v78
  %232 = vmatpush.msra.mxu0 %v77
  %233 = vmatmul.f32.gmra.mxu0 %v39
  %v234 = vpop.f32.mrf.mxu0
  %v235 = vadd.f32 %v215, %v234
  %236 = vdwg.mxu0
  %237 = vmatpush.msra.mxu0 %v108
  %238 = vmatpush.msra.mxu0 %v107
  %239 = vmatpush.msra.mxu0 %v106
  %240 = vmatpush.msra.mxu0 %v105
  %241 = vmatpush.msra.mxu0 %v104
  %242 = vmatpush.msra.mxu0 %v103
  %243 = vmatpush.msra.mxu0 %v102
  %244 = vmatpush.msra.mxu0 %v101
  %245 = vmatpush.msra.mxu0 %v100
  %246 = vmatpush.msra.mxu0 %v99
  %247 = vmatpush.msra.mxu0 %v98
  %248 = vmatpush.msra.mxu0 %v97
  %249 = vmatpush.msra.mxu0 %v96
  %250 = vmatpush.msra.mxu0 %v95
  %251 = vmatpush.msra.mxu0 %v94
  %252 = vmatpush.msra.mxu0 %v93
  %253 = vmatmul.f32.gmra.mxu0 %v40
  %v254 = vpop.f32.mrf.mxu0
  %v255 = vadd.f32 %v235, %v254
  %256 = vdwg.mxu0
  %257 = vmatpush.msra.mxu0 %v124
  %258 = vmatpush.msra.mxu0 %v123
  %259 = vmatpush.msra.mxu0 %v122
  %260 = vmatpush.msra.mxu0 %v121
  %261 = vmatpush.msra.mxu0 %v120
  %262 = vmatpush.msra.mxu0 %v119
  %263 = vmatpush.msra.mxu0 %v118
  %264 = vmatpush.msra.mxu0 %v117
  %265 = vmatpush.msra.mxu0 %v116
  %266 = vmatpush.msra.mxu0 %v115
  %267 = vmatpush.msra.mxu0 %v114
  %268 = vmatpush.msra.mxu0 %v113
  %269 = vmatpush.msra.mxu0 %v112
  %270 = vmatpush.msra.mxu0 %v111
  %271 = vmatpush.msra.mxu0 %v110
  %272 = vmatpush.msra.mxu0 %v109
  %273 = vmatmul.f32.gmra.mxu0 %v41
  %v274 = vpop.f32.mrf.mxu0
  %v275 = vadd.f32 %v255, %v274
  %276 = vdwg.mxu0
  %277 = vmatpush.msra.mxu0 %v140
  %278 = vmatpush.msra.mxu0 %v139
  %279 = vmatpush.msra.mxu0 %v138
  %280 = vmatpush.msra.mxu0 %v137
  %281 = vmatpush.msra.mxu0 %v136
  %282 = vmatpush.msra.mxu0 %v135
  %283 = vmatpush.msra.mxu0 %v134
  %284 = vmatpush.msra.mxu0 %v133
  %285 = vmatpush.msra.mxu0 %v132
  %286 = vmatpush.msra.mxu0 %v131
  %287 = vmatpush.msra.mxu0 %v130
  %288 = vmatpush.msra.mxu0 %v129
  %289 = vmatpush.msra.mxu0 %v128
  %290 = vmatpush.msra.mxu0 %v127
  %291 = vmatpush.msra.mxu0 %v126
  %292 = vmatpush.msra.mxu0 %v125
  %293 = vmatmul.f32.gmra.mxu0 %v42
  %v294 = vpop.f32.mrf.mxu0
  %v295 = vadd.f32 %v275, %v294
  %296 = vdwg.mxu0
  %297 = vmatpush.msra.mxu0 %v156
  %298 = vmatpush.msra.mxu0 %v155
  %299 = vmatpush.msra.mxu0 %v154
  %300 = vmatpush.msra.mxu0 %v153
  %301 = vmatpush.msra.mxu0 %v152
  %302 = vmatpush.msra.mxu0 %v151
  %303 = vmatpush.msra.mxu0 %v150
  %304 = vmatpush.msra.mxu0 %v149
  %305 = vmatpush.msra.mxu0 %v148
  %306 = vmatpush.msra.mxu0 %v147
  %307 = vmatpush.msra.mxu0 %v146
  %308 = vmatpush.msra.mxu0 %v145
  %309 = vmatpush.msra.mxu0 %v144
  %310 = vmatpush.msra.mxu0 %v143
  %311 = vmatpush.msra.mxu0 %v142
  %312 = vmatpush.msra.mxu0 %v141
  %313 = vmatmul.f32.gmra.mxu0 %v43
  %v314 = vpop.f32.mrf.mxu0
  %v315 = vadd.f32 %v295, %v314
  %316 = vdwg.mxu0
  %317 = vmatpush.msra.mxu0 %v172
  %318 = vmatpush.msra.mxu0 %v171
  %319 = vmatpush.msra.mxu0 %v170
  %320 = vmatpush.msra.mxu0 %v169
  %321 = vmatpush.msra.mxu0 %v168
  %322 = vmatpush.msra.mxu0 %v167
  %323 = vmatpush.msra.mxu0 %v166
  %324 = vmatpush.msra.mxu0 %v165
  %325 = vmatpush.msra.mxu0 %v164
  %326 = vmatpush.msra.mxu0 %v163
  %327 = vmatpush.msra.mxu0 %v162
  %328 = vmatpush.msra.mxu0 %v161
  %329 = vmatpush.msra.mxu0 %v160
  %330 = vmatpush.msra.mxu0 %v159
  %331 = vmatpush.msra.mxu0 %v158
  %332 = vmatpush.msra.mxu0 %v157
  %333 = vmatmul.f32.gmra.mxu0 %v44
  %v334 = vpop.f32.mrf.mxu0
  %v335 = vadd.f32 %v315, %v334
  %336 = vdwg.mxu0
  %v337 = vmax.f32 %v335, 0.0
  %v338 = vld [vmem:[%s4] sm:$0xff]
  %v339 = vld [vmem:[%s4 + $0x8] sm:$0xff]
  %v340 = vld [vmem:[%s4 + $0x10] sm:$0xff]
  %v341 = vld [vmem:[%s4 + $0x18] sm:$0xff]
  %v342 = vld [vmem:[%s4 + $0x20] sm:$0xff]
  %v343 = vld [vmem:[%s4 + $0x28] sm:$0xff]
  %v344 = vld [vmem:[%s4 + $0x30] sm:$0xff]
  %v345 = vld [vmem:[%s4 + $0x38] sm:$0xff]
  %v346 = vld [vmem:[%s5] sm:$0x3]
  %v348 = vperm.slane %v346, 0
  %v349 = vperm.slane %v346, 1
  %vm352 = vcmask 261120
  %v354 = vsel %vm352, %v337, 0
  %356 = vmatpush.msra.mxu0 0.0
  %357 = vmatpush.msra.mxu0 0.0
  %358 = vmatpush.msra.mxu0 0.0
  %359 = vmatpush.msra.mxu0 0.0
  %360 = vmatpush.msra.mxu0 0.0
  %361 = vmatpush.msra.mxu0 0.0
  %362 = vmatpush.msra.mxu0 0.0
  %363 = vmatpush.msra.mxu0 0.0
  %364 = vmatpush.msra.mxu0 0.0
  %365 = vmatpush.msra.mxu0 0.0
  %366 = vmatpush.msra.mxu0 0.0
  %367 = vmatpush.msra.mxu0 0.0
  %368 = vmatpush.msra.mxu0 %v344
  %369 = vmatpush.msra.mxu0 %v342
  %370 = vmatpush.msra.mxu0 %v340
  %371 = vmatpush.msra.mxu0 %v338
  %372 = vmatmul.f32.gmra.mxu0 %v354
  %v373 = vpop.f32.mrf.mxu0
  %v374 = vadd.f32 %v348, %v373
  %375 = vdwg.mxu0
  %376 = vmatpush.msra.mxu0 0.0
  %377 = vmatpush.msra.mxu0 0.0
  %378 = vmatpush.msra.mxu0 0.0
  %379 = vmatpush.msra.mxu0 0.0
  %380 = vmatpush.msra.mxu0 0.0
  %381 = vmatpush.msra.mxu0 0.0
  %382 = vmatpush.msra.mxu0 0.0
  %383 = vmatpush.msra.mxu0 0.0
  %384 = vmatpush.msra.mxu0 0.0
  %385 = vmatpush.msra.mxu0 0.0
  %386 = vmatpush.msra.mxu0 0.0
  %387 = vmatpush.msra.mxu0 0.0
  %388 = vmatpush.msra.mxu0 %v345
  %389 = vmatpush.msra.mxu0 %v343
  %390 = vmatpush.msra.mxu0 %v341
  %391 = vmatpush.msra.mxu0 %v339
  %392 = vmatmul.f32.gmra.mxu0 %v354
  %v393 = vpop.f32.mrf.mxu0
  %v394 = vadd.f32 %v349, %v393
  %395 = vdwg.mxu0
  %396 = vst [vmem:[%s11] sm:$0xff] %v374
  %397 = vst [vmem:[%s11 + $0x8] sm:$0xff] %v394
  %v398 = vmul.f32 %v394, 0.5
  %v399 = vmul.f32 %v398, 1.442695
  %v400 = vpow.pop %v399
  %v401 = vld [vmem:[%s1] sm:$0xff]
  %v402 = vmul.f32 %v400, %v401
  %v403 = vadd.f32 %v374, %v402
  %v404 = vld [vmem:[%s6] sm:$0xff]
  %v405 = vld [vmem:[%s6 + $0x8] sm:$0xff]
  %v406 = vld [vmem:[%s6 + $0x10] sm:$0xff]
  %v407 = vld [vmem:[%s6 + $0x18] sm:$0xff]
  %v408 = vld [vmem:[%s6 + $0x20] sm:$0xff]
  %v409 = vld [vmem:[%s6 + $0x28] sm:$0xff]
  %v410 = vld [vmem:[%s6 + $0x30] sm:$0xff]
  %v411 = vld [vmem:[%s6 + $0x38] sm:$0xff]
  %v412 = vld [vmem:[%s6 + $0x40] sm:$0xff]
  %v413 = vld [vmem:[%s6 + $0x48] sm:$0xff]
  %v414 = vld [vmem:[%s6 + $0x50] sm:$0xff]
  %v415 = vld [vmem:[%s6 + $0x58] sm:$0xff]
  %v416 = vld [vmem:[%s6 + $0x60] sm:$0xff]
  %v417 = vld [vmem:[%s6 + $0x68] sm:$0xff]
  %v418 = vld [vmem:[%s6 + $0x70] sm:$0xff]
  %v419 = vld [vmem:[%s6 + $0x78] sm:$0xff]
  %v420 = vld [vmem:[%s7] sm:$0x1]
  %v422 = vperm.slane %v420, 0
  %424 = vmatpush.msra.mxu0 %v419
  %425 = vmatpush.msra.mxu0 %v418
  %426 = vmatpush.msra.mxu0 %v417
  %427 = vmatpush.msra.mxu0 %v416
  %428 = vmatpush.msra.mxu0 %v415
  %429 = vmatpush.msra.mxu0 %v414
  %430 = vmatpush.msra.mxu0 %v413
  %431 = vmatpush.msra.mxu0 %v412
  %432 = vmatpush.msra.mxu0 %v411
  %433 = vmatpush.msra.mxu0 %v410
  %434 = vmatpush.msra.mxu0 %v409
  %435 = vmatpush.msra.mxu0 %v408
  %436 = vmatpush.msra.mxu0 %v407
  %437 = vmatpush.msra.mxu0 %v406
  %438 = vmatpush.msra.mxu0 %v405
  %439 = vmatpush.msra.mxu0 %v404
  %440 = vmatmul.f32.gmra.mxu0 %v403
  %v441 = vpop.f32.mrf.mxu0
  %v442 = vadd.f32 %v422, %v441
  %443 = vdwg.mxu0
  %v444 = vmax.f32 %v442, 0.0
  %v445 = vld [vmem:[%s8] sm:$0xff]
  %v446 = vld [vmem:[%s8 + $0x8] sm:$0xff]
  %v447 = vld [vmem:[%s8 + $0x10] sm:$0xff]
  %v448 = vld [vmem:[%s8 + $0x18] sm:$0xff]
  %v449 = vld [vmem:[%s8 + $0x20] sm:$0xff]
  %v450 = vld [vmem:[%s8 + $0x28] sm:$0xff]
  %v451 = vld [vmem:[%s8 + $0x30] sm:$0xff]
  %v452 = vld [vmem:[%s8 + $0x38] sm:$0xff]
  %v453 = vld [vmem:[%s8 + $0x40] sm:$0xff]
  %v454 = vld [vmem:[%s8 + $0x48] sm:$0xff]
  %v455 = vld [vmem:[%s8 + $0x50] sm:$0xff]
  %v456 = vld [vmem:[%s8 + $0x58] sm:$0xff]
  %v457 = vld [vmem:[%s8 + $0x60] sm:$0xff]
  %v458 = vld [vmem:[%s8 + $0x68] sm:$0xff]
  %v459 = vld [vmem:[%s8 + $0x70] sm:$0xff]
  %v460 = vld [vmem:[%s8 + $0x78] sm:$0xff]
  %v461 = vld [vmem:[%s8 + $0x80] sm:$0xff]
  %v462 = vld [vmem:[%s8 + $0x88] sm:$0xff]
  %v463 = vld [vmem:[%s8 + $0x90] sm:$0xff]
  %v464 = vld [vmem:[%s8 + $0x98] sm:$0xff]
  %v465 = vld [vmem:[%s8 + $0xa0] sm:$0xff]
  %v466 = vld [vmem:[%s8 + $0xa8] sm:$0xff]
  %v467 = vld [vmem:[%s8 + $0xb0] sm:$0xff]
  %v468 = vld [vmem:[%s8 + $0xb8] sm:$0xff]
  %v469 = vld [vmem:[%s8 + $0xc0] sm:$0xff]
  %v470 = vld [vmem:[%s8 + $0xc8] sm:$0xff]
  %v471 = vld [vmem:[%s8 + $0xd0] sm:$0xff]
  %v472 = vld [vmem:[%s8 + $0xd8] sm:$0xff]
  %v473 = vld [vmem:[%s8 + $0xe0] sm:$0xff]
  %v474 = vld [vmem:[%s8 + $0xe8] sm:$0xff]
  %v475 = vld [vmem:[%s8 + $0xf0] sm:$0xff]
  %v476 = vld [vmem:[%s8 + $0xf8] sm:$0xff]
  %v477 = vld [vmem:[%s9] sm:$0xff]
  %v479 = vperm.slane %v477, 0
  %v480 = vperm.slane %v477, 1
  %v481 = vperm.slane %v477, 2
  %v482 = vperm.slane %v477, 3
  %v483 = vperm.slane %v477, 4
  %v484 = vperm.slane %v477, 5
  %v485 = vperm.slane %v477, 6
  %v486 = vperm.slane %v477, 7
  %v496 = vsel %vm352, %v444, 0
  %498 = vmatpush.msra.mxu0 0.0
  %499 = vmatpush.msra.mxu0 0.0
  %500 = vmatpush.msra.mxu0 0.0
  %501 = vmatpush.msra.mxu0 0.0
  %502 = vmatpush.msra.mxu0 0.0
  %503 = vmatpush.msra.mxu0 0.0
  %504 = vmatpush.msra.mxu0 0.0
  %505 = vmatpush.msra.mxu0 0.0
  %506 = vmatpush.msra.mxu0 0.0
  %507 = vmatpush.msra.mxu0 0.0
  %508 = vmatpush.msra.mxu0 0.0
  %509 = vmatpush.msra.mxu0 0.0
  %510 = vmatpush.msra.mxu0 %v469
  %511 = vmatpush.msra.mxu0 %v461
  %512 = vmatpush.msra.mxu0 %v453
  %513 = vmatpush.msra.mxu0 %v445
  %514 = vmatmul.f32.gmra.mxu0 %v496
  %v515 = vpop.f32.mrf.mxu0
  %v516 = vadd.f32 %v479, %v515
  %517 = vdwg.mxu0
  %518 = vmatpush.msra.mxu0 0.0
  %519 = vmatpush.msra.mxu0 0.0
  %520 = vmatpush.msra.mxu0 0.0
  %521 = vmatpush.msra.mxu0 0.0
  %522 = vmatpush.msra.mxu0 0.0
  %523 = vmatpush.msra.mxu0 0.0
  %524 = vmatpush.msra.mxu0 0.0
  %525 = vmatpush.msra.mxu0 0.0
  %526 = vmatpush.msra.mxu0 0.0
  %527 = vmatpush.msra.mxu0 0.0
  %528 = vmatpush.msra.mxu0 0.0
  %529 = vmatpush.msra.mxu0 0.0
  %530 = vmatpush.msra.mxu0 %v470
  %531 = vmatpush.msra.mxu0 %v462
  %532 = vmatpush.msra.mxu0 %v454
  %533 = vmatpush.msra.mxu0 %v446
  %534 = vmatmul.f32.gmra.mxu0 %v496
  %v535 = vpop.f32.mrf.mxu0
  %v536 = vadd.f32 %v480, %v535
  %537 = vdwg.mxu0
  %538 = vmatpush.msra.mxu0 0.0
  %539 = vmatpush.msra.mxu0 0.0
  %540 = vmatpush.msra.mxu0 0.0
  %541 = vmatpush.msra.mxu0 0.0
  %542 = vmatpush.msra.mxu0 0.0
  %543 = vmatpush.msra.mxu0 0.0
  %544 = vmatpush.msra.mxu0 0.0
  %545 = vmatpush.msra.mxu0 0.0
  %546 = vmatpush.msra.mxu0 0.0
  %547 = vmatpush.msra.mxu0 0.0
  %548 = vmatpush.msra.mxu0 0.0
  %549 = vmatpush.msra.mxu0 0.0
  %550 = vmatpush.msra.mxu0 %v471
  %551 = vmatpush.msra.mxu0 %v463
  %552 = vmatpush.msra.mxu0 %v455
  %553 = vmatpush.msra.mxu0 %v447
  %554 = vmatmul.f32.gmra.mxu0 %v496
  %v555 = vpop.f32.mrf.mxu0
  %v556 = vadd.f32 %v481, %v555
  %557 = vdwg.mxu0
  %558 = vmatpush.msra.mxu0 0.0
  %559 = vmatpush.msra.mxu0 0.0
  %560 = vmatpush.msra.mxu0 0.0
  %561 = vmatpush.msra.mxu0 0.0
  %562 = vmatpush.msra.mxu0 0.0
  %563 = vmatpush.msra.mxu0 0.0
  %564 = vmatpush.msra.mxu0 0.0
  %565 = vmatpush.msra.mxu0 0.0
  %566 = vmatpush.msra.mxu0 0.0
  %567 = vmatpush.msra.mxu0 0.0
  %568 = vmatpush.msra.mxu0 0.0
  %569 = vmatpush.msra.mxu0 0.0
  %570 = vmatpush.msra.mxu0 %v472
  %571 = vmatpush.msra.mxu0 %v464
  %572 = vmatpush.msra.mxu0 %v456
  %573 = vmatpush.msra.mxu0 %v448
  %574 = vmatmul.f32.gmra.mxu0 %v496
  %v575 = vpop.f32.mrf.mxu0
  %v576 = vadd.f32 %v482, %v575
  %577 = vdwg.mxu0
  %578 = vmatpush.msra.mxu0 0.0
  %579 = vmatpush.msra.mxu0 0.0
  %580 = vmatpush.msra.mxu0 0.0
  %581 = vmatpush.msra.mxu0 0.0
  %582 = vmatpush.msra.mxu0 0.0
  %583 = vmatpush.msra.mxu0 0.0
  %584 = vmatpush.msra.mxu0 0.0
  %585 = vmatpush.msra.mxu0 0.0
  %586 = vmatpush.msra.mxu0 0.0
  %587 = vmatpush.msra.mxu0 0.0
  %588 = vmatpush.msra.mxu0 0.0
  %589 = vmatpush.msra.mxu0 0.0
  %590 = vmatpush.msra.mxu0 %v473
  %591 = vmatpush.msra.mxu0 %v465
  %592 = vmatpush.msra.mxu0 %v457
  %593 = vmatpush.msra.mxu0 %v449
  %594 = vmatmul.f32.gmra.mxu0 %v496
  %v595 = vpop.f32.mrf.mxu0
  %v596 = vadd.f32 %v483, %v595
  %597 = vdwg.mxu0
  %598 = vmatpush.msra.mxu0 0.0
  %599 = vmatpush.msra.mxu0 0.0
  %600 = vmatpush.msra.mxu0 0.0
  %601 = vmatpush.msra.mxu0 0.0
  %602 = vmatpush.msra.mxu0 0.0
  %603 = vmatpush.msra.mxu0 0.0
  %604 = vmatpush.msra.mxu0 0.0
  %605 = vmatpush.msra.mxu0 0.0
  %606 = vmatpush.msra.mxu0 0.0
  %607 = vmatpush.msra.mxu0 0.0
  %608 = vmatpush.msra.mxu0 0.0
  %609 = vmatpush.msra.mxu0 0.0
  %610 = vmatpush.msra.mxu0 %v474
  %611 = vmatpush.msra.mxu0 %v466
  %612 = vmatpush.msra.mxu0 %v458
  %613 = vmatpush.msra.mxu0 %v450
  %614 = vmatmul.f32.gmra.mxu0 %v496
  %v615 = vpop.f32.mrf.mxu0
  %v616 = vadd.f32 %v484, %v615
  %617 = vdwg.mxu0
  %618 = vmatpush.msra.mxu0 0.0
  %619 = vmatpush.msra.mxu0 0.0
  %620 = vmatpush.msra.mxu0 0.0
  %621 = vmatpush.msra.mxu0 0.0
  %622 = vmatpush.msra.mxu0 0.0
  %623 = vmatpush.msra.mxu0 0.0
  %624 = vmatpush.msra.mxu0 0.0
  %625 = vmatpush.msra.mxu0 0.0
  %626 = vmatpush.msra.mxu0 0.0
  %627 = vmatpush.msra.mxu0 0.0
  %628 = vmatpush.msra.mxu0 0.0
  %629 = vmatpush.msra.mxu0 0.0
  %630 = vmatpush.msra.mxu0 %v475
  %631 = vmatpush.msra.mxu0 %v467
  %632 = vmatpush.msra.mxu0 %v459
  %633 = vmatpush.msra.mxu0 %v451
  %634 = vmatmul.f32.gmra.mxu0 %v496
  %v635 = vpop.f32.mrf.mxu0
  %v636 = vadd.f32 %v485, %v635
  %637 = vdwg.mxu0
  %638 = vmatpush.msra.mxu0 0.0
  %639 = vmatpush.msra.mxu0 0.0
  %640 = vmatpush.msra.mxu0 0.0
  %641 = vmatpush.msra.mxu0 0.0
  %642 = vmatpush.msra.mxu0 0.0
  %643 = vmatpush.msra.mxu0 0.0
  %644 = vmatpush.msra.mxu0 0.0
  %645 = vmatpush.msra.mxu0 0.0
  %646 = vmatpush.msra.mxu0 0.0
  %647 = vmatpush.msra.mxu0 0.0
  %648 = vmatpush.msra.mxu0 0.0
  %649 = vmatpush.msra.mxu0 0.0
  %650 = vmatpush.msra.mxu0 %v476
  %651 = vmatpush.msra.mxu0 %v468
  %652 = vmatpush.msra.mxu0 %v460
  %653 = vmatpush.msra.mxu0 %v452
  %654 = vmatmul.f32.gmra.mxu0 %v496
  %v655 = vpop.f32.mrf.mxu0
  %v656 = vadd.f32 %v486, %v655
  %657 = vdwg.mxu0
  %v658 = vxor.u32 %v516, 2147483648
  %v659 = vxor.u32 %v536, 2147483648
  %v660 = vxor.u32 %v556, 2147483648
  %v661 = vxor.u32 %v576, 2147483648
  %v662 = vxor.u32 %v596, 2147483648
  %v663 = vxor.u32 %v616, 2147483648
  %v664 = vxor.u32 %v636, 2147483648
  %v665 = vxor.u32 %v656, 2147483648
  %v666 = vmul.f32 %v658, 1.442695
  %v667 = vpow.pop %v666
  %v668 = vmul.f32 %v659, 1.442695
  %v669 = vpow.pop %v668
  %v670 = vmul.f32 %v660, 1.442695
  %v671 = vpow.pop %v670
  %v672 = vmul.f32 %v661, 1.442695
  %v673 = vpow.pop %v672
  %v674 = vmul.f32 %v662, 1.442695
  %v675 = vpow.pop %v674
  %v676 = vmul.f32 %v663, 1.442695
  %v677 = vpow.pop %v676
  %v678 = vmul.f32 %v664, 1.442695
  %v679 = vpow.pop %v678
  %v680 = vmul.f32 %v665, 1.442695
  %v681 = vpow.pop %v680
  %v682 = vadd.f32 %v667, 1.0
  %v683 = vadd.f32 %v669, 1.0
  %v684 = vadd.f32 %v671, 1.0
  %v685 = vadd.f32 %v673, 1.0
  %v686 = vadd.f32 %v675, 1.0
  %v687 = vadd.f32 %v677, 1.0
  %v688 = vadd.f32 %v679, 1.0
  %v689 = vadd.f32 %v681, 1.0
  %v690 = vrcp.pop %v682
  %v691 = vmul.f32 %v682, %v690
  %v692 = vsub.f32 1.0, %v691
  %v693 = vmul.f32 %v690, %v692
  %v694 = vadd.f32 %v690, %v693
  %vm695 = vweird.f32 %v682
  %vm696 = vweird.f32 %v690
  %vm697 = vmor %vm695, %vm696
  %v698 = vsel %vm697, %v690, %v694
  %v699 = vand.u32 2147483647, %v682
  %vm700 = vcmp.eq.f32.partialorder %v699, 8.507059e+37
  %v701 = vand.u32 %v682, 2147483648
  %v702 = vor.u32 1.1754944e-38, %v701
  %v703 = vsel %vm700, %v702, %v698
  %v704 = vmul.f32 1.0, %v703
  %v705 = vrcp.pop %v683
  %v706 = vmul.f32 %v683, %v705
  %v707 = vsub.f32 1.0, %v706
  %v708 = vmul.f32 %v705, %v707
  %v709 = vadd.f32 %v705, %v708
  %vm710 = vweird.f32 %v683
  %vm711 = vweird.f32 %v705
  %vm712 = vmor %vm710, %vm711
  %v713 = vsel %vm712, %v705, %v709
  %v714 = vand.u32 2147483647, %v683
  %vm715 = vcmp.eq.f32.partialorder %v714, 8.507059e+37
  %v716 = vand.u32 %v683, 2147483648
  %v717 = vor.u32 1.1754944e-38, %v716
  %v718 = vsel %vm715, %v717, %v713
  %v719 = vmul.f32 1.0, %v718
  %v720 = vrcp.pop %v684
  %v721 = vmul.f32 %v684, %v720
  %v722 = vsub.f32 1.0, %v721
  %v723 = vmul.f32 %v720, %v722
  %v724 = vadd.f32 %v720, %v723
  %vm725 = vweird.f32 %v684
  %vm726 = vweird.f32 %v720
  %vm727 = vmor %vm725, %vm726
  %v728 = vsel %vm727, %v720, %v724
  %v729 = vand.u32 2147483647, %v684
  %vm730 = vcmp.eq.f32.partialorder %v729, 8.507059e+37
  %v731 = vand.u32 %v684, 2147483648
  %v732 = vor.u32 1.1754944e-38, %v731
  %v733 = vsel %vm730, %v732, %v728
  %v734 = vmul.f32 1.0, %v733
  %v735 = vrcp.pop %v685
  %v736 = vmul.f32 %v685, %v735
  %v737 = vsub.f32 1.0, %v736
  %v738 = vmul.f32 %v735, %v737
  %v739 = vadd.f32 %v735, %v738
  %vm740 = vweird.f32 %v685
  %vm741 = vweird.f32 %v735
  %vm742 = vmor %vm740, %vm741
  %v743 = vsel %vm742, %v735, %v739
  %v744 = vand.u32 2147483647, %v685
  %vm745 = vcmp.eq.f32.partialorder %v744, 8.507059e+37
  %v746 = vand.u32 %v685, 2147483648
  %v747 = vor.u32 1.1754944e-38, %v746
  %v748 = vsel %vm745, %v747, %v743
  %v749 = vmul.f32 1.0, %v748
  %v750 = vrcp.pop %v686
  %v751 = vmul.f32 %v686, %v750
  %v752 = vsub.f32 1.0, %v751
  %v753 = vmul.f32 %v750, %v752
  %v754 = vadd.f32 %v750, %v753
  %vm755 = vweird.f32 %v686
  %vm756 = vweird.f32 %v750
  %vm757 = vmor %vm755, %vm756
  %v758 = vsel %vm757, %v750, %v754
  %v759 = vand.u32 2147483647, %v686
  %vm760 = vcmp.eq.f32.partialorder %v759, 8.507059e+37
  %v761 = vand.u32 %v686, 2147483648
  %v762 = vor.u32 1.1754944e-38, %v761
  %v763 = vsel %vm760, %v762, %v758
  %v764 = vmul.f32 1.0, %v763
  %v765 = vrcp.pop %v687
  %v766 = vmul.f32 %v687, %v765
  %v767 = vsub.f32 1.0, %v766
  %v768 = vmul.f32 %v765, %v767
  %v769 = vadd.f32 %v765, %v768
  %vm770 = vweird.f32 %v687
  %vm771 = vweird.f32 %v765
  %vm772 = vmor %vm770, %vm771
  %v773 = vsel %vm772, %v765, %v769
  %v774 = vand.u32 2147483647, %v687
  %vm775 = vcmp.eq.f32.partialorder %v774, 8.507059e+37
  %v776 = vand.u32 %v687, 2147483648
  %v777 = vor.u32 1.1754944e-38, %v776
  %v778 = vsel %vm775, %v777, %v773
  %v779 = vmul.f32 1.0, %v778
  %v780 = vrcp.pop %v688
  %v781 = vmul.f32 %v688, %v780
  %v782 = vsub.f32 1.0, %v781
  %v783 = vmul.f32 %v780, %v782
  %v784 = vadd.f32 %v780, %v783
  %vm785 = vweird.f32 %v688
  %vm786 = vweird.f32 %v780
  %vm787 = vmor %vm785, %vm786
  %v788 = vsel %vm787, %v780, %v784
  %v789 = vand.u32 2147483647, %v688
  %vm790 = vcmp.eq.f32.partialorder %v789, 8.507059e+37
  %v791 = vand.u32 %v688, 2147483648
  %v792 = vor.u32 1.1754944e-38, %v791
  %v793 = vsel %vm790, %v792, %v788
  %v794 = vmul.f32 1.0, %v793
  %v795 = vrcp.pop %v689
  %v796 = vmul.f32 %v689, %v795
  %v797 = vsub.f32 1.0, %v796
  %v798 = vmul.f32 %v795, %v797
  %v799 = vadd.f32 %v795, %v798
  %vm800 = vweird.f32 %v689
  %vm801 = vweird.f32 %v795
  %vm802 = vmor %vm800, %vm801
  %v803 = vsel %vm802, %v795, %v799
  %v804 = vand.u32 2147483647, %v689
  %vm805 = vcmp.eq.f32.partialorder %v804, 8.507059e+37
  %v806 = vand.u32 %v689, 2147483648
  %v807 = vor.u32 1.1754944e-38, %v806
  %v808 = vsel %vm805, %v807, %v803
  %v809 = vmul.f32 1.0, %v808
  %810 = vst [vmem:[%s10] sm:$0xff] %v704
  %811 = vst [vmem:[%s10 + $0x8] sm:$0xff] %v719
  %812 = vst [vmem:[%s10 + $0x10] sm:$0xff] %v734
  %813 = vst [vmem:[%s10 + $0x18] sm:$0xff] %v749
  %814 = vst [vmem:[%s10 + $0x20] sm:$0xff] %v764
  %815 = vst [vmem:[%s10 + $0x28] sm:$0xff] %v779
  %816 = vst [vmem:[%s10 + $0x30] sm:$0xff] %v794
  %817 = vst [vmem:[%s10 + $0x38] sm:$0xff] %v809
  // Predicated region
  $region42: #{face_generator_forward.1} parent=0 // pred_check
    _
  $region43: #{face_generator_forward.1} parent=0 // pred_check_branch
    %819 = sbr.rel (0) target = $region45
  $region44: #{face_generator_forward.1} parent=0 // pred_region
    _
  $region45: #{face_generator_forward.1} parent=0 // pred_fallthru
    _
  // Predicated region
  $region46: #{face_generator_forward.1} parent=0 // pred_check
    _
  $region47: #{face_generator_forward.1} parent=0 // pred_check_branch
    %821 = sbr.rel (0) target = $region49
  $region48: #{face_generator_forward.1} parent=0 // pred_region
    _
  $region49: #{face_generator_forward.1} parent=0 // pred_fallthru
    _
  // Predicated region
  $region50: #{face_generator_forward.1} parent=0 // pred_check
    _
  $region51: #{face_generator_forward.1} parent=0 // pred_check_branch
    %823 = sbr.rel (0) target = $region53
  $region52: #{face_generator_forward.1} parent=0 // pred_region
    _
  $region53: #{face_generator_forward.1} parent=0 // pred_fallthru
    _
  // Predicated region
  $region54: #{face_generator_forward.1} parent=0 // pred_check
    _
  $region55: #{face_generator_forward.1} parent=0 // pred_check_branch
    %825 = sbr.rel (0) target = $region57
  $region56: #{face_generator_forward.1} parent=0 // pred_region
    _
  $region57: #{face_generator_forward.1} parent=0 // pred_fallthru
    _

</llo_original>
